<compile_context>
chip_gen: v6e
topology: v6e:2x2x1
jax: 0.10.0
libtpu: 0.0.40
codegen_flags: <defaults>
</compile_context>

<pallas_src>
import functools
import numpy as np
import jax
import jax.numpy as jnp
from jax import lax
from jax.experimental import pallas as pl
from jax.experimental.pallas import tpu as pltpu

N_COS = 64
HIDDEN = 128


def _iqn_kernel(x_ref, taus_ref, w1_ref, wstack_ref, bstack_ref, out_ref, *, action_size):
    rows = x_ref.shape[0]

    biases = bstack_ref[...]                       # (8, 128)
    b1 = biases[0:1, :]
    b2 = biases[1:2, :]
    b3 = biases[2:3, :]
    bc = biases[3:4, :]
    bh = biases[4:5, :]

    w2 = wstack_ref[0 * HIDDEN:1 * HIDDEN, :]      # (128, 128)
    w3 = wstack_ref[1 * HIDDEN:2 * HIDDEN, :]
    wc = wstack_ref[2 * HIDDEN:3 * HIDDEN, :]      # zero-padded cos-embedding weight
    wh = wstack_ref[3 * HIDDEN:4 * HIDDEN, :]      # fused dueling head

    # --- state MLP at M = B*num_tau (x pre-replicated per tau; no rep matmul) ---
    h = jnp.maximum(
        jnp.dot(x_ref[...], w1_ref[...], preferred_element_type=jnp.float32) + b1, 0.0)
    h = jnp.maximum(jnp.dot(h, w2, preferred_element_type=jnp.float32) + b2, 0.0)
    h = jnp.maximum(jnp.dot(h, w3, preferred_element_type=jnp.float32) + b3, 0.0)

    # --- cosine embedding, lane-dense: cos(tau * pi * i) over 128 lanes, masked past n_cos ---
    lane = lax.broadcasted_iota(jnp.int32, (rows, HIDDEN), 1)
    ang = taus_ref[...] * (jnp.float32(np.pi) * lane.astype(jnp.float32))
    cosv = jnp.where(lane < N_COS, jnp.cos(ang), 0.0)            # (rows, 128)
    cos_x = jnp.maximum(jnp.dot(cosv, wc, preferred_element_type=jnp.float32) + bc, 0.0)

    # --- state/quantile mix: pure VPU elementwise ---
    mixed = h * cos_x                                            # (rows, 128)

    # --- fused dueling head: cols [0, A) = advantage, col A = value, rest zero ---
    va = jnp.dot(mixed, wh, preferred_element_type=jnp.float32) + bh
    a_mean = jnp.sum(jnp.where(lane < action_size, va, 0.0),
                     axis=-1, keepdims=True) * (1.0 / action_size)
    v = jnp.sum(jnp.where(lane == action_size, va, 0.0), axis=-1, keepdims=True)
    # q valid in cols [0, action_size); write full 128-lane slab -> unmasked stores.
    out_ref[...] = v + va - a_mean


def pack_params(params, action_size):
    """Pack the 12 Linear params into 3 kernel inputs (done once, outside the kernel)."""
    wh = jnp.zeros((HIDDEN, HIDDEN), jnp.float32)
    wh = wh.at[:, :action_size].set(params["wa"])
    wh = wh.at[:, action_size:action_size + 1].set(params["wv"])
    bh = jnp.zeros((1, HIDDEN), jnp.float32)
    bh = bh.at[:, :action_size].set(params["ba"])
    bh = bh.at[:, action_size:action_size + 1].set(params["bv"])

    wc_pad = jnp.zeros((HIDDEN, HIDDEN), jnp.float32).at[:N_COS, :].set(params["wc"])

    w_stack = jnp.concatenate([params["w2"], params["w3"], wc_pad, wh], axis=0)  # (512, 128)
    b_stack = jnp.concatenate(
        [params["b1"], params["b2"], params["b3"], params["bc"], bh,
         jnp.zeros((3, HIDDEN), jnp.float32)], axis=0)                           # (8, 128)
    return params["w1"], w_stack, b_stack


def iqn_forward(x, taus, params, num_tau, action_size):
    """x: (B, state_size) f32, taus: (B, num_tau) f32.
    Returns (q (B, num_tau, A), taus (B, num_tau, 1))."""
    B, state_size = x.shape
    rows = B * num_tau

    x_rep = jnp.repeat(x.astype(jnp.float32), num_tau, axis=0)     # (rows, S)
    taus_flat = taus.reshape(rows, 1).astype(jnp.float32)
    w1, w_stack, b_stack = pack_params(params, action_size)

    inputs = (x_rep, taus_flat, w1, w_stack, b_stack)

    flops = 2 * rows * HIDDEN * (state_size + 4 * HIDDEN)
    bytes_accessed = sum(int(np.prod(a.shape)) * 4 for a in inputs) + rows * HIDDEN * 4

    vmem = pl.BlockSpec(memory_space=pltpu.MemorySpace.VMEM)
    out = pl.pallas_call(
        functools.partial(_iqn_kernel, action_size=action_size),
        out_shape=jax.ShapeDtypeStruct((rows, HIDDEN), jnp.float32),
        in_specs=[vmem] * len(inputs),
        out_specs=vmem,
        cost_estimate=pl.CostEstimate(
            flops=flops, transcendentals=rows * HIDDEN, bytes_accessed=bytes_accessed),
    )(*inputs)

    q = out[:, :action_size].reshape(B, num_tau, action_size)
    return q, taus.reshape(B, num_tau, 1)


def init_params(key, state_size, action_size):
    """Deterministic init mirroring nn.Linear shapes (weights stored transposed: [in, out])."""
    def linear(k, fan_in, fan_out):
        kw, kb = jax.random.split(k)
        bound = 1.0 / np.sqrt(fan_in)
        w = jax.random.uniform(kw, (fan_in, fan_out), jnp.float32, -bound, bound)
        b = jax.random.uniform(kb, (1, fan_out), jnp.float32, -bound, bound)
        return w, b

    keys = jax.random.split(key, 6)
    p = {}
    p["w1"], p["b1"] = linear(keys[0], state_size, HIDDEN)
    p["w2"], p["b2"] = linear(keys[1], HIDDEN, HIDDEN)
    p["w3"], p["b3"] = linear(keys[2], HIDDEN, HIDDEN)
    p["wc"], p["bc"] = linear(keys[3], N_COS, HIDDEN)
    p["wv"], p["bv"] = linear(keys[4], HIDDEN, 1)
    p["wa"], p["ba"] = linear(keys[5], HIDDEN, action_size)
    return p


def iqn_reference(x, taus, params, num_tau, action_size):
    """Pure-JAX reference replicating the PyTorch forward semantics."""
    B = x.shape[0]
    h = jax.nn.relu(x @ params["w1"] + params["b1"])
    h = jax.nn.relu(h @ params["w2"] + params["b2"])
    h = jax.nn.relu(h @ params["w3"] + params["b3"])
    pis = (np.pi * jnp.arange(N_COS, dtype=jnp.float32)).reshape(1, 1, N_COS)
    cos = jnp.cos(taus[:, :, None] * pis).reshape(B * num_tau, N_COS)
    cos_x = jax.nn.relu(cos @ params["wc"] + params["bc"]).reshape(B, num_tau, HIDDEN)
    mixed = (h[:, None, :] * cos_x).reshape(B * num_tau, HIDDEN)
    v = (mixed @ params["wv"] + params["bv"]).reshape(B, num_tau, 1)
    a = (mixed @ params["wa"] + params["ba"]).reshape(B, num_tau, action_size)
    return v + (a - a.mean(axis=2, keepdims=True))


if __name__ == "__main__":
    state_size = 16
    action_size = 4
    batch = 2
    num_tau = 8

    key = jax.random.PRNGKey(0)
    k_params, k_x, k_tau = jax.random.split(key, 3)

    params = init_params(k_params, state_size, action_size)
    x = jax.random.normal(k_x, (batch, state_size), dtype=jnp.float32)
    # calc_cos uses torch.rand; sample taus deterministically here and feed them in.
    taus = jax.random.uniform(k_tau, (batch, num_tau), dtype=jnp.float32)

    q, taus_out = iqn_forward(x, taus, params, num_tau, action_size)
    q = jax.block_until_ready(q)
    taus_out = jax.block_until_ready(taus_out)

    q_ref = iqn_reference(x, taus, params, num_tau, action_size)
    np.testing.assert_allclose(np.asarray(q), np.asarray(q_ref), rtol=1e-5, atol=1e-5)
    assert q.shape == (batch, num_tau, action_size)
    assert taus_out.shape == (batch, num_tau, 1)

    print("KERNEL_OK")
</pallas_src>

<mosaic_0001>
module attributes {stable_mosaic.version = 11 : i64} {
  func.func @_iqn_kernel(%arg0: memref<16x16xf32, #tpu.memory_space<vmem>>, %arg1: memref<16x1xf32, #tpu.memory_space<vmem>>, %arg2: memref<16x128xf32, #tpu.memory_space<vmem>>, %arg3: memref<512x128xf32, #tpu.memory_space<vmem>>, %arg4: memref<8x128xf32, #tpu.memory_space<vmem>>, %arg5: memref<16x128xf32, #tpu.memory_space<vmem>>) attributes {dimension_semantics = [], scalar_prefetch = 0 : i64, scratch_operands = 0 : i64, tpu.core_type = #tpu.core_type<tc>} {
    %c0 = arith.constant 0 : index
    %c0_0 = arith.constant 0 : index
    %0 = vector.load %arg4[%c0, %c0_0] : memref<8x128xf32, #tpu.memory_space<vmem>>, vector<8x128xf32>
    %1 = vector.extract_strided_slice %0 {offsets = [0, 0], sizes = [1, 128], strides = [1, 1]} : vector<8x128xf32> to vector<1x128xf32>
    %2 = vector.extract_strided_slice %0 {offsets = [1, 0], sizes = [1, 128], strides = [1, 1]} : vector<8x128xf32> to vector<1x128xf32>
    %3 = vector.extract_strided_slice %0 {offsets = [2, 0], sizes = [1, 128], strides = [1, 1]} : vector<8x128xf32> to vector<1x128xf32>
    %4 = vector.extract_strided_slice %0 {offsets = [3, 0], sizes = [1, 128], strides = [1, 1]} : vector<8x128xf32> to vector<1x128xf32>
    %5 = vector.extract_strided_slice %0 {offsets = [4, 0], sizes = [1, 128], strides = [1, 1]} : vector<8x128xf32> to vector<1x128xf32>
    %c0_1 = arith.constant 0 : index
    %c0_2 = arith.constant 0 : index
    %6 = vector.load %arg3[%c0_1, %c0_2] : memref<512x128xf32, #tpu.memory_space<vmem>>, vector<128x128xf32>
    %c128 = arith.constant 128 : index
    %c0_3 = arith.constant 0 : index
    %7 = vector.load %arg3[%c128, %c0_3] : memref<512x128xf32, #tpu.memory_space<vmem>>, vector<128x128xf32>
    %c256 = arith.constant 256 : index
    %c0_4 = arith.constant 0 : index
    %8 = vector.load %arg3[%c256, %c0_4] : memref<512x128xf32, #tpu.memory_space<vmem>>, vector<128x128xf32>
    %c384 = arith.constant 384 : index
    %c0_5 = arith.constant 0 : index
    %9 = vector.load %arg3[%c384, %c0_5] : memref<512x128xf32, #tpu.memory_space<vmem>>, vector<128x128xf32>
    %c0_6 = arith.constant 0 : index
    %c0_7 = arith.constant 0 : index
    %10 = vector.load %arg0[%c0_6, %c0_7] : memref<16x16xf32, #tpu.memory_space<vmem>>, vector<16x16xf32>
    %c0_8 = arith.constant 0 : index
    %c0_9 = arith.constant 0 : index
    %11 = vector.load %arg2[%c0_8, %c0_9] : memref<16x128xf32, #tpu.memory_space<vmem>>, vector<16x128xf32>
    %cst = arith.constant dense<0.000000e+00> : vector<16x128xf32>
    %12 = tpu.matmul %10, %11, %cst {dimension_numbers = #tpu.dot_dimension_numbers<[1], [0], [0], [1], [0, 0, 1, 1], [], []>} : vector<16x16xf32>, vector<16x128xf32>, vector<16x128xf32> -> vector<16x128xf32>
    %13 = vector.broadcast %1 : vector<1x128xf32> to vector<16x128xf32>
    %14 = arith.addf %12, %13 : vector<16x128xf32>
    %cst_10 = arith.constant 0.000000e+00 : f32
    %15 = vector.broadcast %cst_10 : f32 to vector<16x128xf32>
    %16 = arith.maximumf %14, %15 : vector<16x128xf32>
    %cst_11 = arith.constant dense<0.000000e+00> : vector<16x128xf32>
    %17 = tpu.matmul %16, %6, %cst_11 {dimension_numbers = #tpu.dot_dimension_numbers<[1], [0], [0], [1], [0, 0, 1, 1], [], []>} : vector<16x128xf32>, vector<128x128xf32>, vector<16x128xf32> -> vector<16x128xf32>
    %18 = vector.broadcast %2 : vector<1x128xf32> to vector<16x128xf32>
    %19 = arith.addf %17, %18 : vector<16x128xf32>
    %cst_12 = arith.constant 0.000000e+00 : f32
    %20 = vector.broadcast %cst_12 : f32 to vector<16x128xf32>
    %21 = arith.maximumf %19, %20 : vector<16x128xf32>
    %cst_13 = arith.constant dense<0.000000e+00> : vector<16x128xf32>
    %22 = tpu.matmul %21, %7, %cst_13 {dimension_numbers = #tpu.dot_dimension_numbers<[1], [0], [0], [1], [0, 0, 1, 1], [], []>} : vector<16x128xf32>, vector<128x128xf32>, vector<16x128xf32> -> vector<16x128xf32>
    %23 = vector.broadcast %3 : vector<1x128xf32> to vector<16x128xf32>
    %24 = arith.addf %22, %23 : vector<16x128xf32>
    %cst_14 = arith.constant 0.000000e+00 : f32
    %25 = vector.broadcast %cst_14 : f32 to vector<16x128xf32>
    %26 = arith.maximumf %24, %25 : vector<16x128xf32>
    %27 = tpu.iota {dimensions = array<i32: 1>} : vector<16x128xi32>
    %c0_15 = arith.constant 0 : index
    %c0_16 = arith.constant 0 : index
    %28 = vector.load %arg1[%c0_15, %c0_16] : memref<16x1xf32, #tpu.memory_space<vmem>>, vector<16x1xf32>
    %29 = arith.sitofp %27 : vector<16x128xi32> to vector<16x128xf32>
    %cst_17 = arith.constant 3.14159274 : f32
    %30 = vector.broadcast %cst_17 : f32 to vector<16x128xf32>
    %31 = arith.mulf %30, %29 : vector<16x128xf32>
    %32 = vector.broadcast %28 : vector<16x1xf32> to vector<16x128xf32>
    %33 = arith.mulf %32, %31 : vector<16x128xf32>
    %c64_i32 = arith.constant 64 : i32
    %34 = vector.broadcast %c64_i32 : i32 to vector<16x128xi32>
    %35 = arith.cmpi slt, %27, %34 : vector<16x128xi32>
    %36 = math.cos %33 : vector<16x128xf32>
    %cst_18 = arith.constant 0.000000e+00 : f32
    %37 = vector.broadcast %cst_18 : f32 to vector<16x128xf32>
    %38 = arith.select %35, %36, %37 : vector<16x128xi1>, vector<16x128xf32>
    %cst_19 = arith.constant dense<0.000000e+00> : vector<16x128xf32>
    %39 = tpu.matmul %38, %8, %cst_19 {dimension_numbers = #tpu.dot_dimension_numbers<[1], [0], [0], [1], [0, 0, 1, 1], [], []>} : vector<16x128xf32>, vector<128x128xf32>, vector<16x128xf32> -> vector<16x128xf32>
    %40 = vector.broadcast %4 : vector<1x128xf32> to vector<16x128xf32>
    %41 = arith.addf %39, %40 : vector<16x128xf32>
    %cst_20 = arith.constant 0.000000e+00 : f32
    %42 = vector.broadcast %cst_20 : f32 to vector<16x128xf32>
    %43 = arith.maximumf %41, %42 : vector<16x128xf32>
    %44 = arith.mulf %26, %43 : vector<16x128xf32>
    %cst_21 = arith.constant dense<0.000000e+00> : vector<16x128xf32>
    %45 = tpu.matmul %44, %9, %cst_21 {dimension_numbers = #tpu.dot_dimension_numbers<[1], [0], [0], [1], [0, 0, 1, 1], [], []>} : vector<16x128xf32>, vector<128x128xf32>, vector<16x128xf32> -> vector<16x128xf32>
    %46 = vector.broadcast %5 : vector<1x128xf32> to vector<16x128xf32>
    %47 = arith.addf %45, %46 : vector<16x128xf32>
    %c4_i32 = arith.constant 4 : i32
    %48 = vector.broadcast %c4_i32 : i32 to vector<16x128xi32>
    %49 = arith.cmpi slt, %27, %48 : vector<16x128xi32>
    %cst_22 = arith.constant 0.000000e+00 : f32
    %50 = vector.broadcast %cst_22 : f32 to vector<16x128xf32>
    %51 = arith.select %49, %47, %50 : vector<16x128xi1>, vector<16x128xf32>
    %cst_23 = arith.constant dense<0.000000e+00> : vector<16xf32>
    %52 = vector.multi_reduction <add>, %51, %cst_23 [1] : vector<16x128xf32> to vector<16xf32>
    %53 = vector.shape_cast %52 : vector<16xf32> to vector<16x1xf32>
    %cst_24 = arith.constant 2.500000e-01 : f32
    %54 = vector.broadcast %cst_24 : f32 to vector<16x1xf32>
    %55 = arith.mulf %53, %54 : vector<16x1xf32>
    %c4_i32_25 = arith.constant 4 : i32
    %56 = vector.broadcast %c4_i32_25 : i32 to vector<16x128xi32>
    %57 = arith.cmpi eq, %27, %56 : vector<16x128xi32>
    %cst_26 = arith.constant 0.000000e+00 : f32
    %58 = vector.broadcast %cst_26 : f32 to vector<16x128xf32>
    %59 = arith.select %57, %47, %58 : vector<16x128xi1>, vector<16x128xf32>
    %cst_27 = arith.constant dense<0.000000e+00> : vector<16xf32>
    %60 = vector.multi_reduction <add>, %59, %cst_27 [1] : vector<16x128xf32> to vector<16xf32>
    %61 = vector.shape_cast %60 : vector<16xf32> to vector<16x1xf32>
    %62 = vector.broadcast %61 : vector<16x1xf32> to vector<16x128xf32>
    %63 = arith.addf %62, %47 : vector<16x128xf32>
    %64 = vector.broadcast %55 : vector<16x1xf32> to vector<16x128xf32>
    %65 = arith.subf %63, %64 : vector<16x128xf32>
    %c0_28 = arith.constant 0 : index
    %c0_29 = arith.constant 0 : index
    %66 = vector.load %arg5[%c0_28, %c0_29] : memref<16x128xf32, #tpu.memory_space<vmem>>, vector<16x128xf32>
    tpu.vector_store %arg5[%c0_28, %c0_29], %65 {strides = array<i32>} : memref<16x128xf32, #tpu.memory_space<vmem>>, vector<16x128xf32>,
    return
  }
}

</mosaic_0001>

<llo_original>
// kernel: tpu_custom_call.1
$region0: #{tpu_custom_call.1}
  #allocation0 [shape = 'u32[]', space=smem, size = 0x4, offset = 0x4, fixed_abs, tag = 'smem constant byte address 0x4 - core index']
  #allocation1 [shape = 'u32[144,128]{1,0:T(1,128)}', space=vmem, size = 0x12000, scoped, tag = 'internal scratch']
  %s0 = inlined_call_operand.vmem [shape: f32[16,16], index: 0, kind: input, shape index: {}]
  %s1 = inlined_call_operand.vmem [shape: f32[16,1], index: 1, kind: input, shape index: {}]
  %s2 = inlined_call_operand.hbm [shape: f32[16,128], index: 2, kind: input, shape index: {}]
  %s3 = inlined_call_operand.hbm [shape: f32[512,128], index: 3, kind: input, shape index: {}]
  %s4 = inlined_call_operand.vmem [shape: f32[8,128], index: 4, kind: input, shape index: {}]
  %s5 = inlined_call_operand.hbm [shape: f32[16,128], index: 5, kind: output, shape index: {}]
  %s6 = sld [smem:[#allocation0]]
  $region38: #{tpu_custom_call.1} parent=0
    _
  %s8 = ssub.s32 1, %s6
  %s9 = scalar_select 0, %s8, %s6
  $region1: #{tpu_custom_call.1} parent=0
    #allocation2 [shape = 'u8[8192]{0}', space=vmem, size = 0x2000, scoped, tag = 'input window, operand 2, single buffered']
    #allocation3 [shape = 's32[1]{0}', space=sflag, size = 0x4, scoped, tag = 'scoped memory for tpu_custom_call.1']
    #allocation4 [shape = 's32[1]{0}', space=sflag, size = 0x4, scoped, tag = 'scoped memory for tpu_custom_call.1']
    #allocation5 [shape = 'u8[262144]{0}', space=vmem, size = 0x40000, scoped, tag = 'input window, operand 3, single buffered']
    #allocation6 [shape = 's32[1]{0}', space=sflag, size = 0x4, scoped, tag = 'scoped memory for tpu_custom_call.1']
    #allocation7 [shape = 'u8[8192]{0}', space=vmem, size = 0x2000, scoped, tag = 'output window, operand 0, single buffered']
    %10 = vsyncpa [#allocation3], 0
    %11 = vsyncpa [#allocation6], 0
    %12 = vsyncpa [#allocation4], 0
    // Predicated region
    $region2: #{tpu_custom_call.1} parent=1 // pred_check
      _
    $region3: #{tpu_custom_call.1} parent=1 // pred_check_branch
      %14 = sbr.rel (0) target = $region5
    $region4: #{tpu_custom_call.1} parent=1 // pred_region
      _
    $region5: #{tpu_custom_call.1} parent=1 // pred_fallthru
      _
    // Predicated region
    $region6: #{tpu_custom_call.1} parent=1 // pred_check
      _
    $region7: #{tpu_custom_call.1} parent=1 // pred_check_branch
      %16 = sbr.rel (0) target = $region9
    $region8: #{tpu_custom_call.1} parent=1 // pred_region
      _
    $region9: #{tpu_custom_call.1} parent=1 // pred_fallthru
      _
    // Predicated region
    $region10: #{tpu_custom_call.1} parent=1 // pred_check
      _
    $region11: #{tpu_custom_call.1} parent=1 // pred_check_branch
      %18 = sbr.rel (0) target = $region13
    $region12: #{tpu_custom_call.1} parent=1 // pred_region
      %s20 = ssub.s32 256, 256
      %21 = vsyncadd [#allocation3], %s20
      %s22 = sshll.u32 [#allocation2], 4
      %s23 = int_to_ptr.vmem [resolvable:$true] %s22
      %28 = dma.hbm_to_vmem [thread:$0]  %s2, 256, %s23, [#allocation3], 128, 128, 8
    $region13: #{tpu_custom_call.1} parent=1 // pred_fallthru
      _
    // Predicated region
    $region14: #{tpu_custom_call.1} parent=1 // pred_check
      _
    $region15: #{tpu_custom_call.1} parent=1 // pred_check_branch
      %30 = sbr.rel (0) target = $region17
    $region16: #{tpu_custom_call.1} parent=1 // pred_region
      %s32 = ssub.s32 8192, 8192
      %33 = vsyncadd [#allocation6], %s32
      %s34 = sshll.u32 [#allocation5], 4
      %s35 = int_to_ptr.vmem [resolvable:$true] %s34
      %40 = dma.hbm_to_vmem [thread:$0]  %s3, 8192, %s35, [#allocation6], 128, 128, 8
    $region17: #{tpu_custom_call.1} parent=1 // pred_fallthru
      _
    // Predicated region
    $region18: #{tpu_custom_call.1} parent=1 // pred_check
      _
    $region19: #{tpu_custom_call.1} parent=1 // pred_check_branch
      %42 = sbr.rel (0) target = $region21
    $region20: #{tpu_custom_call.1} parent=1 // pred_region
      _
    $region21: #{tpu_custom_call.1} parent=1 // pred_fallthru
      _
    // Predicated region
    $region22: #{tpu_custom_call.1} parent=1 // pred_check
      _
    $region23: #{tpu_custom_call.1} parent=1 // pred_check_branch
      %44 = sbr.rel (0) target = $region25
    $region24: #{tpu_custom_call.1} parent=1 // pred_region
      %45 = dma.done [#allocation3], 256
    $region25: #{tpu_custom_call.1} parent=1 // pred_fallthru
      _
    // Predicated region
    $region26: #{tpu_custom_call.1} parent=1 // pred_check
      _
    $region27: #{tpu_custom_call.1} parent=1 // pred_check_branch
      %47 = sbr.rel (0) target = $region29
    $region28: #{tpu_custom_call.1} parent=1 // pred_region
      %48 = dma.done [#allocation6], 8192
    $region29: #{tpu_custom_call.1} parent=1 // pred_fallthru
      _
    %v49 = vld [vmem:[%s4] sm:$0xff]
    %v50 = vld [vmem:[#allocation5] sm:$0xff]
    %v51 = vld [vmem:[#allocation5 + $0x8] sm:$0xff]
    %v52 = vld [vmem:[#allocation5 + $0x10] sm:$0xff]
    %v53 = vld [vmem:[#allocation5 + $0x18] sm:$0xff]
    %v54 = vld [vmem:[#allocation5 + $0x20] sm:$0xff]
    %v55 = vld [vmem:[#allocation5 + $0x28] sm:$0xff]
    %v56 = vld [vmem:[#allocation5 + $0x30] sm:$0xff]
    %v57 = vld [vmem:[#allocation5 + $0x38] sm:$0xff]
    %v58 = vld [vmem:[#allocation5 + $0x40] sm:$0xff]
    %v59 = vld [vmem:[#allocation5 + $0x48] sm:$0xff]
    %v60 = vld [vmem:[#allocation5 + $0x50] sm:$0xff]
    %v61 = vld [vmem:[#allocation5 + $0x58] sm:$0xff]
    %v62 = vld [vmem:[#allocation5 + $0x60] sm:$0xff]
    %v63 = vld [vmem:[#allocation5 + $0x68] sm:$0xff]
    %v64 = vld [vmem:[#allocation5 + $0x70] sm:$0xff]
    %v65 = vld [vmem:[#allocation5 + $0x78] sm:$0xff]
    %v66 = vld [vmem:[#allocation5 + $0x80] sm:$0xff]
    %v67 = vld [vmem:[#allocation5 + $0x88] sm:$0xff]
    %v68 = vld [vmem:[#allocation5 + $0x90] sm:$0xff]
    %v69 = vld [vmem:[#allocation5 + $0x98] sm:$0xff]
    %v70 = vld [vmem:[#allocation5 + $0xa0] sm:$0xff]
    %v71 = vld [vmem:[#allocation5 + $0xa8] sm:$0xff]
    %v72 = vld [vmem:[#allocation5 + $0xb0] sm:$0xff]
    %v73 = vld [vmem:[#allocation5 + $0xb8] sm:$0xff]
    %v74 = vld [vmem:[#allocation5 + $0xc0] sm:$0xff]
    %v75 = vld [vmem:[#allocation5 + $0xc8] sm:$0xff]
    %v76 = vld [vmem:[#allocation5 + $0xd0] sm:$0xff]
    %v77 = vld [vmem:[#allocation5 + $0xd8] sm:$0xff]
    %v78 = vld [vmem:[#allocation5 + $0xe0] sm:$0xff]
    %v79 = vld [vmem:[#allocation5 + $0xe8] sm:$0xff]
    %v80 = vld [vmem:[#allocation5 + $0xf0] sm:$0xff]
    %v81 = vld [vmem:[#allocation5 + $0xf8] sm:$0xff]
    %v82 = vld [vmem:[#allocation5 + $0x100] sm:$0xff]
    %v83 = vld [vmem:[#allocation5 + $0x108] sm:$0xff]
    %v84 = vld [vmem:[#allocation5 + $0x110] sm:$0xff]
    %v85 = vld [vmem:[#allocation5 + $0x118] sm:$0xff]
    %v86 = vld [vmem:[#allocation5 + $0x120] sm:$0xff]
    %v87 = vld [vmem:[#allocation5 + $0x128] sm:$0xff]
    %v88 = vld [vmem:[#allocation5 + $0x130] sm:$0xff]
    %v89 = vld [vmem:[#allocation5 + $0x138] sm:$0xff]
    %v90 = vld [vmem:[#allocation5 + $0x140] sm:$0xff]
    %v91 = vld [vmem:[#allocation5 + $0x148] sm:$0xff]
    %v92 = vld [vmem:[#allocation5 + $0x150] sm:$0xff]
    %v93 = vld [vmem:[#allocation5 + $0x158] sm:$0xff]
    %v94 = vld [vmem:[#allocation5 + $0x160] sm:$0xff]
    %v95 = vld [vmem:[#allocation5 + $0x168] sm:$0xff]
    %v96 = vld [vmem:[#allocation5 + $0x170] sm:$0xff]
    %v97 = vld [vmem:[#allocation5 + $0x178] sm:$0xff]
    %v98 = vld [vmem:[#allocation5 + $0x180] sm:$0xff]
    %v99 = vld [vmem:[#allocation5 + $0x188] sm:$0xff]
    %v100 = vld [vmem:[#allocation5 + $0x190] sm:$0xff]
    %v101 = vld [vmem:[#allocation5 + $0x198] sm:$0xff]
    %v102 = vld [vmem:[#allocation5 + $0x1a0] sm:$0xff]
    %v103 = vld [vmem:[#allocation5 + $0x1a8] sm:$0xff]
    %v104 = vld [vmem:[#allocation5 + $0x1b0] sm:$0xff]
    %v105 = vld [vmem:[#allocation5 + $0x1b8] sm:$0xff]
    %v106 = vld [vmem:[#allocation5 + $0x1c0] sm:$0xff]
    %v107 = vld [vmem:[#allocation5 + $0x1c8] sm:$0xff]
    %v108 = vld [vmem:[#allocation5 + $0x1d0] sm:$0xff]
    %v109 = vld [vmem:[#allocation5 + $0x1d8] sm:$0xff]
    %v110 = vld [vmem:[#allocation5 + $0x1e0] sm:$0xff]
    %v111 = vld [vmem:[#allocation5 + $0x1e8] sm:$0xff]
    %v112 = vld [vmem:[#allocation5 + $0x1f0] sm:$0xff]
    %v113 = vld [vmem:[#allocation5 + $0x1f8] sm:$0xff]
    %v114 = vld [vmem:[%s0] sm:$0xff]
    %v115 = vld [vmem:[%s0 + $0x8] sm:$0xff]
    %v116 = vld [vmem:[#allocation2] sm:$0xff]
    %v117 = vld [vmem:[#allocation2 + $0x8] sm:$0xff]
    %v118 = vlaneseq
    %v119 = vshrl.u32 %v118, 7
    %v120 = vsub.s32 0, %v119
    %v121 = vrot.slane %v49, %v120
    %vm122 = vcmask 130048
    %v124 = vsel %vm122, %v114, 0
    %v127 = vsel %vm122, %v115, 0
    %129 = vmatprep.subr.mxu0 0.0
    %130 = vmatpush1.msra.mxu0 0.0
    %131 = vmatprep.subr.mxu0 0.0
    %132 = vmatpush1.msra.mxu0 0.0
    %133 = vmatprep.subr.mxu0 0.0
    %134 = vmatpush1.msra.mxu0 0.0
    %135 = vmatprep.subr.mxu0 0.0
    %136 = vmatpush1.msra.mxu0 0.0
    %137 = vmatprep.subr.mxu0 0.0
    %138 = vmatpush1.msra.mxu0 0.0
    %139 = vmatprep.subr.mxu0 0.0
    %140 = vmatpush1.msra.mxu0 0.0
    %141 = vmatprep.subr.mxu0 0.0
    %142 = vmatpush1.msra.mxu0 0.0
    %143 = vmatprep.subr.mxu0 0.0
    %144 = vmatpush1.msra.mxu0 0.0
    %145 = vmatprep.subr.mxu0 0.0
    %146 = vmatpush1.msra.mxu0 0.0
    %147 = vmatprep.subr.mxu0 0.0
    %148 = vmatpush1.msra.mxu0 0.0
    %149 = vmatprep.subr.mxu0 0.0
    %150 = vmatpush1.msra.mxu0 0.0
    %151 = vmatprep.subr.mxu0 0.0
    %152 = vmatpush1.msra.mxu0 0.0
    %153 = vmatprep.subr.mxu0 0.0
    %154 = vmatpush1.msra.mxu0 0.0
    %155 = vmatprep.subr.mxu0 0.0
    %156 = vmatpush1.msra.mxu0 0.0
    %157 = vmatprep.subr.mxu0 0.0
    %158 = vmatpush1.msra.mxu0 %v117
    %159 = vmatprep.subr.mxu0 0.0
    %160 = vmatpush1.msra.mxu0 %v116
    %161 = vmatprep.subr.mxu0 0.0
    %162 = vmatpush2.msra.mxu0 0.0
    %163 = vmatprep.subr.mxu0 0.0
    %164 = vmatpush2.msra.mxu0 0.0
    %165 = vmatprep.subr.mxu0 0.0
    %166 = vmatpush2.msra.mxu0 0.0
    %167 = vmatprep.subr.mxu0 0.0
    %168 = vmatpush2.msra.mxu0 0.0
    %169 = vmatprep.subr.mxu0 0.0
    %170 = vmatpush2.msra.mxu0 0.0
    %171 = vmatprep.subr.mxu0 0.0
    %172 = vmatpush2.msra.mxu0 0.0
    %173 = vmatprep.subr.mxu0 0.0
    %174 = vmatpush2.msra.mxu0 0.0
    %175 = vmatprep.subr.mxu0 0.0
    %176 = vmatpush2.msra.mxu0 0.0
    %177 = vmatprep.subr.mxu0 0.0
    %178 = vmatpush2.msra.mxu0 0.0
    %179 = vmatprep.subr.mxu0 0.0
    %180 = vmatpush2.msra.mxu0 0.0
    %181 = vmatprep.subr.mxu0 0.0
    %182 = vmatpush2.msra.mxu0 0.0
    %183 = vmatprep.subr.mxu0 0.0
    %184 = vmatpush2.msra.mxu0 0.0
    %185 = vmatprep.subr.mxu0 0.0
    %186 = vmatpush2.msra.mxu0 0.0
    %187 = vmatprep.subr.mxu0 0.0
    %188 = vmatpush2.msra.mxu0 0.0
    %189 = vmatprep.subr.mxu0 0.0
    %190 = vmatpush2.msra.mxu0 0.0
    %191 = vmatprep.subr.mxu0 0.0
    %192 = vmatpush2.msra.mxu0 0.0
    %193 = vmatprep.mubr.f32.mxu0 0.0
    %194 = vmatmul.mubr.f32.gmra.mxu0 %v124
    %v195 = vpop.f32.mrf.mxu0
    %v196 = vadd.f32 %v121, %v195
    %v197 = vpop.f32.mrf.mxu0
    %198 = vmatprep.mubr.f32.mxu0 0.0
    %199 = vmatmul.mubr.f32.gmra.mxu0 %v127
    %v200 = vpop.f32.mrf.mxu0
    %v201 = vadd.f32 %v121, %v200
    %v202 = vpop.f32.mrf.mxu0
    %203 = vdwg.mxu0
    %v204 = vmax.f32 %v196, 0.0
    %v205 = vmax.f32 %v201, 0.0
    %v206 = vlaneseq
    %v207 = vshrl.u32 %v206, 7
    %v208 = vsub.s32 1, %v207
    %v209 = vrot.slane %v49, %v208
    %210 = vmatprep.subr.mxu0 0.0
    %211 = vmatpush1.msra.mxu0 %v65
    %212 = vmatprep.subr.mxu0 0.0
    %213 = vmatpush1.msra.mxu0 %v64
    %214 = vmatprep.subr.mxu0 0.0
    %215 = vmatpush1.msra.mxu0 %v63
    %216 = vmatprep.subr.mxu0 0.0
    %217 = vmatpush1.msra.mxu0 %v62
    %218 = vmatprep.subr.mxu0 0.0
    %219 = vmatpush1.msra.mxu0 %v61
    %220 = vmatprep.subr.mxu0 0.0
    %221 = vmatpush1.msra.mxu0 %v60
    %222 = vmatprep.subr.mxu0 0.0
    %223 = vmatpush1.msra.mxu0 %v59
    %224 = vmatprep.subr.mxu0 0.0
    %225 = vmatpush1.msra.mxu0 %v58
    %226 = vmatprep.subr.mxu0 0.0
    %227 = vmatpush1.msra.mxu0 %v57
    %228 = vmatprep.subr.mxu0 0.0
    %229 = vmatpush1.msra.mxu0 %v56
    %230 = vmatprep.subr.mxu0 0.0
    %231 = vmatpush1.msra.mxu0 %v55
    %232 = vmatprep.subr.mxu0 0.0
    %233 = vmatpush1.msra.mxu0 %v54
    %234 = vmatprep.subr.mxu0 0.0
    %235 = vmatpush1.msra.mxu0 %v53
    %236 = vmatprep.subr.mxu0 0.0
    %237 = vmatpush1.msra.mxu0 %v52
    %238 = vmatprep.subr.mxu0 0.0
    %239 = vmatpush1.msra.mxu0 %v51
    %240 = vmatprep.subr.mxu0 0.0
    %241 = vmatpush1.msra.mxu0 %v50
    %242 = vmatprep.subr.mxu0 0.0
    %243 = vmatpush2.msra.mxu0 0.0
    %244 = vmatprep.subr.mxu0 0.0
    %245 = vmatpush2.msra.mxu0 0.0
    %246 = vmatprep.subr.mxu0 0.0
    %247 = vmatpush2.msra.mxu0 0.0
    %248 = vmatprep.subr.mxu0 0.0
    %249 = vmatpush2.msra.mxu0 0.0
    %250 = vmatprep.subr.mxu0 0.0
    %251 = vmatpush2.msra.mxu0 0.0
    %252 = vmatprep.subr.mxu0 0.0
    %253 = vmatpush2.msra.mxu0 0.0
    %254 = vmatprep.subr.mxu0 0.0
    %255 = vmatpush2.msra.mxu0 0.0
    %256 = vmatprep.subr.mxu0 0.0
    %257 = vmatpush2.msra.mxu0 0.0
    %258 = vmatprep.subr.mxu0 0.0
    %259 = vmatpush2.msra.mxu0 0.0
    %260 = vmatprep.subr.mxu0 0.0
    %261 = vmatpush2.msra.mxu0 0.0
    %262 = vmatprep.subr.mxu0 0.0
    %263 = vmatpush2.msra.mxu0 0.0
    %264 = vmatprep.subr.mxu0 0.0
    %265 = vmatpush2.msra.mxu0 0.0
    %266 = vmatprep.subr.mxu0 0.0
    %267 = vmatpush2.msra.mxu0 0.0
    %268 = vmatprep.subr.mxu0 0.0
    %269 = vmatpush2.msra.mxu0 0.0
    %270 = vmatprep.subr.mxu0 0.0
    %271 = vmatpush2.msra.mxu0 0.0
    %272 = vmatprep.subr.mxu0 0.0
    %273 = vmatpush2.msra.mxu0 0.0
    %274 = vmatprep.mubr.f32.mxu0 0.0
    %275 = vmatmul.mubr.f32.gmra.mxu0 %v204
    %v276 = vpop.f32.mrf.mxu0
    %v277 = vadd.f32 %v209, %v276
    %v278 = vpop.f32.mrf.mxu0
    %279 = vmatprep.mubr.f32.mxu0 0.0
    %280 = vmatmul.mubr.f32.gmra.mxu0 %v205
    %v281 = vpop.f32.mrf.mxu0
    %v282 = vadd.f32 %v209, %v281
    %v283 = vpop.f32.mrf.mxu0
    %284 = vdwg.mxu0
    %v285 = vmax.f32 %v277, 0.0
    %v286 = vmax.f32 %v282, 0.0
    %v287 = vlaneseq
    %v288 = vshrl.u32 %v287, 7
    %v289 = vsub.s32 2, %v288
    %v290 = vrot.slane %v49, %v289
    %291 = vmatprep.subr.mxu0 0.0
    %292 = vmatpush1.msra.mxu0 %v81
    %293 = vmatprep.subr.mxu0 0.0
    %294 = vmatpush1.msra.mxu0 %v80
    %295 = vmatprep.subr.mxu0 0.0
    %296 = vmatpush1.msra.mxu0 %v79
    %297 = vmatprep.subr.mxu0 0.0
    %298 = vmatpush1.msra.mxu0 %v78
    %299 = vmatprep.subr.mxu0 0.0
    %300 = vmatpush1.msra.mxu0 %v77
    %301 = vmatprep.subr.mxu0 0.0
    %302 = vmatpush1.msra.mxu0 %v76
    %303 = vmatprep.subr.mxu0 0.0
    %304 = vmatpush1.msra.mxu0 %v75
    %305 = vmatprep.subr.mxu0 0.0
    %306 = vmatpush1.msra.mxu0 %v74
    %307 = vmatprep.subr.mxu0 0.0
    %308 = vmatpush1.msra.mxu0 %v73
    %309 = vmatprep.subr.mxu0 0.0
    %310 = vmatpush1.msra.mxu0 %v72
    %311 = vmatprep.subr.mxu0 0.0
    %312 = vmatpush1.msra.mxu0 %v71
    %313 = vmatprep.subr.mxu0 0.0
    %314 = vmatpush1.msra.mxu0 %v70
    %315 = vmatprep.subr.mxu0 0.0
    %316 = vmatpush1.msra.mxu0 %v69
    %317 = vmatprep.subr.mxu0 0.0
    %318 = vmatpush1.msra.mxu0 %v68
    %319 = vmatprep.subr.mxu0 0.0
    %320 = vmatpush1.msra.mxu0 %v67
    %321 = vmatprep.subr.mxu0 0.0
    %322 = vmatpush1.msra.mxu0 %v66
    %323 = vmatprep.subr.mxu0 0.0
    %324 = vmatpush2.msra.mxu0 0.0
    %325 = vmatprep.subr.mxu0 0.0
    %326 = vmatpush2.msra.mxu0 0.0
    %327 = vmatprep.subr.mxu0 0.0
    %328 = vmatpush2.msra.mxu0 0.0
    %329 = vmatprep.subr.mxu0 0.0
    %330 = vmatpush2.msra.mxu0 0.0
    %331 = vmatprep.subr.mxu0 0.0
    %332 = vmatpush2.msra.mxu0 0.0
    %333 = vmatprep.subr.mxu0 0.0
    %334 = vmatpush2.msra.mxu0 0.0
    %335 = vmatprep.subr.mxu0 0.0
    %336 = vmatpush2.msra.mxu0 0.0
    %337 = vmatprep.subr.mxu0 0.0
    %338 = vmatpush2.msra.mxu0 0.0
    %339 = vmatprep.subr.mxu0 0.0
    %340 = vmatpush2.msra.mxu0 0.0
    %341 = vmatprep.subr.mxu0 0.0
    %342 = vmatpush2.msra.mxu0 0.0
    %343 = vmatprep.subr.mxu0 0.0
    %344 = vmatpush2.msra.mxu0 0.0
    %345 = vmatprep.subr.mxu0 0.0
    %346 = vmatpush2.msra.mxu0 0.0
    %347 = vmatprep.subr.mxu0 0.0
    %348 = vmatpush2.msra.mxu0 0.0
    %349 = vmatprep.subr.mxu0 0.0
    %350 = vmatpush2.msra.mxu0 0.0
    %351 = vmatprep.subr.mxu0 0.0
    %352 = vmatpush2.msra.mxu0 0.0
    %353 = vmatprep.subr.mxu0 0.0
    %354 = vmatpush2.msra.mxu0 0.0
    %355 = vmatprep.mubr.f32.mxu0 0.0
    %356 = vmatmul.mubr.f32.gmra.mxu0 %v285
    %v357 = vpop.f32.mrf.mxu0
    %v358 = vadd.f32 %v290, %v357
    %v359 = vpop.f32.mrf.mxu0
    %360 = vmatprep.mubr.f32.mxu0 0.0
    %361 = vmatmul.mubr.f32.gmra.mxu0 %v286
    %v362 = vpop.f32.mrf.mxu0
    %v363 = vadd.f32 %v290, %v362
    %v364 = vpop.f32.mrf.mxu0
    %365 = vdwg.mxu0
    %v366 = vmax.f32 %v358, 0.0
    %v367 = vmax.f32 %v363, 0.0
    %v368 = vlaneseq
    %v369 = vand.u32 %v368, 127
    %v370 = vld [vmem:[%s1] sm:$0xff]
    %v371 = vld [vmem:[%s1 + $0x8] sm:$0xff]
    %v372 = vcvt.s32.f32 %v369
    %v373 = vmul.f32 %v372, 3.1415927
    %375 = vset.pattern.permute.xlu0 0
    %376 = vperm.xlu0 %375, %v370
    %v377 = vpop.permute.xlu0 %376
    %380 = vset.pattern.permute.xlu0 0
    %381 = vperm.xlu0 %380, %v371
    %v382 = vpop.permute.xlu0 %381
    %v384 = vmul.f32 %v377, %v373
    %v385 = vmul.f32 %v382, %v373
    %vm386 = vcmp.lt.s32.totalorder %v369, 64
    %v387 = vand.u32 2147483647, %v384
    %vm388 = vcmp.le.f32.partialorder %v387, 0.7853982
    %vm389 = vcmp.lt.s32.totalorder %v384, 0
    %v390 = vand.u32 %v384, 2139095040
    %v391 = vshrl.u32 %v390, 23
    %v392 = vsub.s32 %v391, 127
    %v393 = vand.u32 2147483647, %v384
    %v394 = vand.u32 %v393, 8388607
    %v395 = vor.u32 %v394, 8388608
    %v396 = vsub.s32 0, %v395
    %v397 = vadd.s32 %v392, 1
    %vm398 = vcmp.gt.s32.totalorder %v397, 0
    %v399 = vsel %vm398, %v397, 0
    %v400 = vshrl.u32 %v399, 5
    %v401 = vand.u32 %v399, 31
    %v402 = vsub.s32 32, %v401
    %v403 = vshrl.u32 683565275, %v402
    %v404 = vshll.u32 683565275, %v401
    %v405 = vshrl.u32 2475754826, %v402
    %v406 = vor.u32 %v404, %v405
    %v407 = vshll.u32 2475754826, %v401
    %v408 = vshrl.u32 2131351028, %v402
    %v409 = vor.u32 %v407, %v408
    %v410 = vshll.u32 2131351028, %v401
    %v411 = vshrl.u32 2102212464, %v402
    %v412 = vor.u32 %v410, %v411
    %v413 = vshll.u32 2102212464, %v401
    %v414 = vshrl.u32 920167782, %v402
    %v415 = vor.u32 %v413, %v414
    %v416 = vshll.u32 920167782, %v401
    %v417 = vshrl.u32 1326507024, %v402
    %v418 = vor.u32 %v416, %v417
    %vm419 = vcmp.lt.s32.totalorder %v400, 1
    %vm420 = vcmp.lt.s32.totalorder %v400, 2
    %vm421 = vcmp.lt.s32.totalorder %v400, 3
    %vm422 = vcmp.lt.s32.totalorder %v400, 4
    %v423 = vsel %vm419, %v403, %v406
    %v424 = vsel %vm422, %v412, 2102212464
    %v425 = vsel %vm421, %v409, %v424
    %v426 = vsel %vm420, %v423, %v425
    %v427 = vsel %vm419, %v406, %v409
    %v428 = vsel %vm422, %v415, 920167782
    %v429 = vsel %vm421, %v412, %v428
    %v430 = vsel %vm420, %v427, %v429
    %v431 = vsel %vm419, %v409, %v412
    %v432 = vsel %vm422, %v418, 1326507024
    %v433 = vsel %vm421, %v415, %v432
    %v434 = vsel %vm420, %v431, %v433
    %v435 = vshll.u32 %v395, 8
    %v436 = vmul.u32.u64.compose %v435, %v434
    %v437 = vextract.low.u32 %v436
    %v438 = vextract.high.u32 %v436
    %v439 = vmul.u32.u64.compose %v435, %v430
    %v440 = vextract.low.u32 %v439
    %v441 = vextract.high.u32 %v439
    %v442 = vmul.u32 %v435, %v426
    %v443 = vadd.s32 %v438, %v440
    %vm444 = vc.u32 %v438, %v440
    %v445 = vadd.s32 %v441, 1
    %v446 = vsel %vm444, %v445, %v441
    %v447 = vadd.s32 %v442, %v446
    %v448 = vadd.s32 %v447, 536870912
    %v449 = vshrl.u32 %v448, 30
    %v450 = vshll.u32 %v449, 30
    %v451 = vsub.s32 %v447, %v450
    %vm452 = vcmp.lt.s32.totalorder %v451, 0
    %v453 = vsub.s32 0, %v451
    %v454 = vsel %vm452, %v453, %v451
    %v455 = vclz %v454
    %v456 = vsub.s32 %v455, 2
    %vm457 = vcmp.gt.s32.totalorder 0, %v456
    %v458 = vsel %vm457, 0, %v456
    %v459 = vsub.s32 32, %v458
    %v460 = vshll.u32 %v451, %v458
    %v461 = vshrl.u32 %v443, %v459
    %v462 = vor.u32 %v460, %v461
    %v463 = vsub.s32 4294967266, %v458
    %v464 = vadd.s32 %v463, 127
    %v465 = vshll.u32 %v464, 23
    %v466 = vor.u32 4788187, %v465
    %v467 = vand.u32 2147483647, %v466
    %v469 = vcvt.s32.f32 %v462
    %v470 = vmul.f32 %v469, %v467
    %v471 = vxor.u32 %v470, 2147483648
    %v472 = vsel %vm389, %v471, %v470
    %v473 = vsub.s32 4, %v449
    %v474 = vsel %vm389, %v473, %v449
    %v475 = vsel %vm388, %v384, %v472
    %v476 = vsel %vm388, 0, %v474
    %v477 = vcosq.f32.pop %v475
    %v478 = vsinq.f32.pop %v475
    %vm479 = vweird.f32 %v384
    %v480 = vand.u32 %v476, 3
    %vm481 = vcmp.lt.s32.totalorder %v480, 2
    %vm482 = vcmp.eq.s32.totalorder %v480, 0
    %v483 = vxor.u32 %v478, 2147483648
    %v484 = vsel %vm482, %v477, %v483
    %vm485 = vcmp.eq.s32.totalorder %v480, 2
    %v486 = vxor.u32 %v477, 2147483648
    %v487 = vsel %vm485, %v486, %v478
    %v488 = vsel %vm481, %v484, %v487
    %v489 = vsel %vm479, nan, %v488
    %v490 = vand.u32 2147483647, %v385
    %vm491 = vcmp.le.f32.partialorder %v490, 0.7853982
    %vm492 = vcmp.lt.s32.totalorder %v385, 0
    %v493 = vand.u32 %v385, 2139095040
    %v494 = vshrl.u32 %v493, 23
    %v495 = vsub.s32 %v494, 127
    %v496 = vand.u32 2147483647, %v385
    %v497 = vand.u32 %v496, 8388607
    %v498 = vor.u32 %v497, 8388608
    %v499 = vsub.s32 0, %v498
    %v500 = vadd.s32 %v495, 1
    %vm501 = vcmp.gt.s32.totalorder %v500, 0
    %v502 = vsel %vm501, %v500, 0
    %v503 = vshrl.u32 %v502, 5
    %v504 = vand.u32 %v502, 31
    %v505 = vsub.s32 32, %v504
    %v506 = vshrl.u32 683565275, %v505
    %v507 = vshll.u32 683565275, %v504
    %v508 = vshrl.u32 2475754826, %v505
    %v509 = vor.u32 %v507, %v508
    %v510 = vshll.u32 2475754826, %v504
    %v511 = vshrl.u32 2131351028, %v505
    %v512 = vor.u32 %v510, %v511
    %v513 = vshll.u32 2131351028, %v504
    %v514 = vshrl.u32 2102212464, %v505
    %v515 = vor.u32 %v513, %v514
    %v516 = vshll.u32 2102212464, %v504
    %v517 = vshrl.u32 920167782, %v505
    %v518 = vor.u32 %v516, %v517
    %v519 = vshll.u32 920167782, %v504
    %v520 = vshrl.u32 1326507024, %v505
    %v521 = vor.u32 %v519, %v520
    %vm522 = vcmp.lt.s32.totalorder %v503, 1
    %vm523 = vcmp.lt.s32.totalorder %v503, 2
    %vm524 = vcmp.lt.s32.totalorder %v503, 3
    %vm525 = vcmp.lt.s32.totalorder %v503, 4
    %v526 = vsel %vm522, %v506, %v509
    %v527 = vsel %vm525, %v515, 2102212464
    %v528 = vsel %vm524, %v512, %v527
    %v529 = vsel %vm523, %v526, %v528
    %v530 = vsel %vm522, %v509, %v512
    %v531 = vsel %vm525, %v518, 920167782
    %v532 = vsel %vm524, %v515, %v531
    %v533 = vsel %vm523, %v530, %v532
    %v534 = vsel %vm522, %v512, %v515
    %v535 = vsel %vm525, %v521, 1326507024
    %v536 = vsel %vm524, %v518, %v535
    %v537 = vsel %vm523, %v534, %v536
    %v538 = vshll.u32 %v498, 8
    %v539 = vmul.u32.u64.compose %v538, %v537
    %v540 = vextract.low.u32 %v539
    %v541 = vextract.high.u32 %v539
    %v542 = vmul.u32.u64.compose %v538, %v533
    %v543 = vextract.low.u32 %v542
    %v544 = vextract.high.u32 %v542
    %v545 = vmul.u32 %v538, %v529
    %v546 = vadd.s32 %v541, %v543
    %vm547 = vc.u32 %v541, %v543
    %v548 = vadd.s32 %v544, 1
    %v549 = vsel %vm547, %v548, %v544
    %v550 = vadd.s32 %v545, %v549
    %v551 = vadd.s32 %v550, 536870912
    %v552 = vshrl.u32 %v551, 30
    %v553 = vshll.u32 %v552, 30
    %v554 = vsub.s32 %v550, %v553
    %vm555 = vcmp.lt.s32.totalorder %v554, 0
    %v556 = vsub.s32 0, %v554
    %v557 = vsel %vm555, %v556, %v554
    %v558 = vclz %v557
    %v559 = vsub.s32 %v558, 2
    %vm560 = vcmp.gt.s32.totalorder 0, %v559
    %v561 = vsel %vm560, 0, %v559
    %v562 = vsub.s32 32, %v561
    %v563 = vshll.u32 %v554, %v561
    %v564 = vshrl.u32 %v546, %v562
    %v565 = vor.u32 %v563, %v564
    %v566 = vsub.s32 4294967266, %v561
    %v567 = vadd.s32 %v566, 127
    %v568 = vshll.u32 %v567, 23
    %v569 = vor.u32 4788187, %v568
    %v570 = vand.u32 2147483647, %v569
    %v572 = vcvt.s32.f32 %v565
    %v573 = vmul.f32 %v572, %v570
    %v574 = vxor.u32 %v573, 2147483648
    %v575 = vsel %vm492, %v574, %v573
    %v576 = vsub.s32 4, %v552
    %v577 = vsel %vm492, %v576, %v552
    %v578 = vsel %vm491, %v385, %v575
    %v579 = vsel %vm491, 0, %v577
    %v580 = vcosq.f32.pop %v578
    %v581 = vsinq.f32.pop %v578
    %vm582 = vweird.f32 %v385
    %v583 = vand.u32 %v579, 3
    %vm584 = vcmp.lt.s32.totalorder %v583, 2
    %vm585 = vcmp.eq.s32.totalorder %v583, 0
    %v586 = vxor.u32 %v581, 2147483648
    %v587 = vsel %vm585, %v580, %v586
    %vm588 = vcmp.eq.s32.totalorder %v583, 2
    %v589 = vxor.u32 %v580, 2147483648
    %v590 = vsel %vm588, %v589, %v581
    %v591 = vsel %vm584, %v587, %v590
    %v592 = vsel %vm582, nan, %v591
    %v593 = vsel %vm386, %v489, 0.0
    %v594 = vsel %vm386, %v592, 0.0
    %v595 = vlaneseq
    %v596 = vshrl.u32 %v595, 7
    %v597 = vsub.s32 3, %v596
    %v598 = vrot.slane %v49, %v597
    %599 = vmatprep.subr.mxu0 0.0
    %600 = vmatpush1.msra.mxu0 %v97
    %601 = vmatprep.subr.mxu0 0.0
    %602 = vmatpush1.msra.mxu0 %v96
    %603 = vmatprep.subr.mxu0 0.0
    %604 = vmatpush1.msra.mxu0 %v95
    %605 = vmatprep.subr.mxu0 0.0
    %606 = vmatpush1.msra.mxu0 %v94
    %607 = vmatprep.subr.mxu0 0.0
    %608 = vmatpush1.msra.mxu0 %v93
    %609 = vmatprep.subr.mxu0 0.0
    %610 = vmatpush1.msra.mxu0 %v92
    %611 = vmatprep.subr.mxu0 0.0
    %612 = vmatpush1.msra.mxu0 %v91
    %613 = vmatprep.subr.mxu0 0.0
    %614 = vmatpush1.msra.mxu0 %v90
    %615 = vmatprep.subr.mxu0 0.0
    %616 = vmatpush1.msra.mxu0 %v89
    %617 = vmatprep.subr.mxu0 0.0
    %618 = vmatpush1.msra.mxu0 %v88
    %619 = vmatprep.subr.mxu0 0.0
    %620 = vmatpush1.msra.mxu0 %v87
    %621 = vmatprep.subr.mxu0 0.0
    %622 = vmatpush1.msra.mxu0 %v86
    %623 = vmatprep.subr.mxu0 0.0
    %624 = vmatpush1.msra.mxu0 %v85
    %625 = vmatprep.subr.mxu0 0.0
    %626 = vmatpush1.msra.mxu0 %v84
    %627 = vmatprep.subr.mxu0 0.0
    %628 = vmatpush1.msra.mxu0 %v83
    %629 = vmatprep.subr.mxu0 0.0
    %630 = vmatpush1.msra.mxu0 %v82
    %631 = vmatprep.subr.mxu0 0.0
    %632 = vmatpush2.msra.mxu0 0.0
    %633 = vmatprep.subr.mxu0 0.0
    %634 = vmatpush2.msra.mxu0 0.0
    %635 = vmatprep.subr.mxu0 0.0
    %636 = vmatpush2.msra.mxu0 0.0
    %637 = vmatprep.subr.mxu0 0.0
    %638 = vmatpush2.msra.mxu0 0.0
    %639 = vmatprep.subr.mxu0 0.0
    %640 = vmatpush2.msra.mxu0 0.0
    %641 = vmatprep.subr.mxu0 0.0
    %642 = vmatpush2.msra.mxu0 0.0
    %643 = vmatprep.subr.mxu0 0.0
    %644 = vmatpush2.msra.mxu0 0.0
    %645 = vmatprep.subr.mxu0 0.0
    %646 = vmatpush2.msra.mxu0 0.0
    %647 = vmatprep.subr.mxu0 0.0
    %648 = vmatpush2.msra.mxu0 0.0
    %649 = vmatprep.subr.mxu0 0.0
    %650 = vmatpush2.msra.mxu0 0.0
    %651 = vmatprep.subr.mxu0 0.0
    %652 = vmatpush2.msra.mxu0 0.0
    %653 = vmatprep.subr.mxu0 0.0
    %654 = vmatpush2.msra.mxu0 0.0
    %655 = vmatprep.subr.mxu0 0.0
    %656 = vmatpush2.msra.mxu0 0.0
    %657 = vmatprep.subr.mxu0 0.0
    %658 = vmatpush2.msra.mxu0 0.0
    %659 = vmatprep.subr.mxu0 0.0
    %660 = vmatpush2.msra.mxu0 0.0
    %661 = vmatprep.subr.mxu0 0.0
    %662 = vmatpush2.msra.mxu0 0.0
    %663 = vmatprep.mubr.f32.mxu0 0.0
    %664 = vmatmul.mubr.f32.gmra.mxu0 %v593
    %v665 = vpop.f32.mrf.mxu0
    %v666 = vadd.f32 %v598, %v665
    %v667 = vpop.f32.mrf.mxu0
    %668 = vmatprep.mubr.f32.mxu0 0.0
    %669 = vmatmul.mubr.f32.gmra.mxu0 %v594
    %v670 = vpop.f32.mrf.mxu0
    %v671 = vadd.f32 %v598, %v670
    %v672 = vpop.f32.mrf.mxu0
    %673 = vdwg.mxu0
    %v674 = vmax.f32 %v666, 0.0
    %v675 = vmax.f32 %v671, 0.0
    %v676 = vmul.f32 %v366, %v674
    %v677 = vmul.f32 %v367, %v675
    %v678 = vlaneseq
    %v679 = vshrl.u32 %v678, 7
    %v680 = vsub.s32 4, %v679
    %v681 = vrot.slane %v49, %v680
    %682 = vmatprep.subr.mxu0 0.0
    %683 = vmatpush1.msra.mxu0 %v113
    %684 = vmatprep.subr.mxu0 0.0
    %685 = vmatpush1.msra.mxu0 %v112
    %686 = vmatprep.subr.mxu0 0.0
    %687 = vmatpush1.msra.mxu0 %v111
    %688 = vmatprep.subr.mxu0 0.0
    %689 = vmatpush1.msra.mxu0 %v110
    %690 = vmatprep.subr.mxu0 0.0
    %691 = vmatpush1.msra.mxu0 %v109
    %692 = vmatprep.subr.mxu0 0.0
    %693 = vmatpush1.msra.mxu0 %v108
    %694 = vmatprep.subr.mxu0 0.0
    %695 = vmatpush1.msra.mxu0 %v107
    %696 = vmatprep.subr.mxu0 0.0
    %697 = vmatpush1.msra.mxu0 %v106
    %698 = vmatprep.subr.mxu0 0.0
    %699 = vmatpush1.msra.mxu0 %v105
    %700 = vmatprep.subr.mxu0 0.0
    %701 = vmatpush1.msra.mxu0 %v104
    %702 = vmatprep.subr.mxu0 0.0
    %703 = vmatpush1.msra.mxu0 %v103
    %704 = vmatprep.subr.mxu0 0.0
    %705 = vmatpush1.msra.mxu0 %v102
    %706 = vmatprep.subr.mxu0 0.0
    %707 = vmatpush1.msra.mxu0 %v101
    %708 = vmatprep.subr.mxu0 0.0
    %709 = vmatpush1.msra.mxu0 %v100
    %710 = vmatprep.subr.mxu0 0.0
    %711 = vmatpush1.msra.mxu0 %v99
    %712 = vmatprep.subr.mxu0 0.0
    %713 = vmatpush1.msra.mxu0 %v98
    %714 = vmatprep.subr.mxu0 0.0
    %715 = vmatpush2.msra.mxu0 0.0
    %716 = vmatprep.subr.mxu0 0.0
    %717 = vmatpush2.msra.mxu0 0.0
    %718 = vmatprep.subr.mxu0 0.0
    %719 = vmatpush2.msra.mxu0 0.0
    %720 = vmatprep.subr.mxu0 0.0
    %721 = vmatpush2.msra.mxu0 0.0
    %722 = vmatprep.subr.mxu0 0.0
    %723 = vmatpush2.msra.mxu0 0.0
    %724 = vmatprep.subr.mxu0 0.0
    %725 = vmatpush2.msra.mxu0 0.0
    %726 = vmatprep.subr.mxu0 0.0
    %727 = vmatpush2.msra.mxu0 0.0
    %728 = vmatprep.subr.mxu0 0.0
    %729 = vmatpush2.msra.mxu0 0.0
    %730 = vmatprep.subr.mxu0 0.0
    %731 = vmatpush2.msra.mxu0 0.0
    %732 = vmatprep.subr.mxu0 0.0
    %733 = vmatpush2.msra.mxu0 0.0
    %734 = vmatprep.subr.mxu0 0.0
    %735 = vmatpush2.msra.mxu0 0.0
    %736 = vmatprep.subr.mxu0 0.0
    %737 = vmatpush2.msra.mxu0 0.0
    %738 = vmatprep.subr.mxu0 0.0
    %739 = vmatpush2.msra.mxu0 0.0
    %740 = vmatprep.subr.mxu0 0.0
    %741 = vmatpush2.msra.mxu0 0.0
    %742 = vmatprep.subr.mxu0 0.0
    %743 = vmatpush2.msra.mxu0 0.0
    %744 = vmatprep.subr.mxu0 0.0
    %745 = vmatpush2.msra.mxu0 0.0
    %746 = vmatprep.mubr.f32.mxu0 0.0
    %747 = vmatmul.mubr.f32.gmra.mxu0 %v676
    %v748 = vpop.f32.mrf.mxu0
    %v749 = vadd.f32 %v681, %v748
    %v750 = vpop.f32.mrf.mxu0
    %751 = vmatprep.mubr.f32.mxu0 0.0
    %752 = vmatmul.mubr.f32.gmra.mxu0 %v677
    %v753 = vpop.f32.mrf.mxu0
    %v754 = vadd.f32 %v681, %v753
    %v755 = vpop.f32.mrf.mxu0
    %756 = vdwg.mxu0
    %vm757 = vcmp.lt.s32.totalorder %v369, 4
    %v758 = vsel %vm757, %v749, 0.0
    %v759 = vsel %vm757, %v754, 0.0
    %760 = vadd.xlane.f32.xlu0 %v758
    %v761 = vpop.xlane.xlu0 %760
    %762 = vadd.xlane.f32.xlu0 %v759
    %v763 = vpop.xlane.xlu0 %762
    %v764 = vmul.f32 %v761, 0.25
    %v765 = vmul.f32 %v763, 0.25
    %vm766 = vcmp.eq.s32.totalorder %v369, 4
    %v767 = vsel %vm766, %v749, 0.0
    %v768 = vsel %vm766, %v754, 0.0
    %769 = vadd.xlane.f32.xlu0 %v767
    %v770 = vpop.xlane.xlu0 %769
    %771 = vadd.xlane.f32.xlu0 %v768
    %v772 = vpop.xlane.xlu0 %771
    %v773 = vadd.f32 %v770, %v749
    %v774 = vadd.f32 %v772, %v754
    %v775 = vsub.f32 %v773, %v764
    %v776 = vsub.f32 %v774, %v765
    %777 = vst [vmem:[#allocation7] sm:$0xff] %v775
    %778 = vst [vmem:[#allocation7 + $0x8] sm:$0xff] %v776
    // Predicated region
    $region30: #{tpu_custom_call.1} parent=1 // pred_check
      _
    $region31: #{tpu_custom_call.1} parent=1 // pred_check_branch
      %780 = sbr.rel (0) target = $region33
    $region32: #{tpu_custom_call.1} parent=1 // pred_region
      %s782 = ssub.s32 256, 256
      %783 = vsyncadd [#allocation4], %s782
      %s784 = sshll.u32 [#allocation7], 4
      %s785 = int_to_ptr.vmem [resolvable:$true] %s784
      %790 = dma.vmem_to_hbm [thread:$0]  %s785, 256, %s5, [#allocation4], 128, 128, 8
    $region33: #{tpu_custom_call.1} parent=1 // pred_fallthru
      _
    // Predicated region
    $region34: #{tpu_custom_call.1} parent=1 // pred_check
      _
    $region35: #{tpu_custom_call.1} parent=1 // pred_check_branch
      %792 = sbr.rel (0) target = $region37
    $region36: #{tpu_custom_call.1} parent=1 // pred_region
      %793 = dma.done [#allocation4], 256
    $region37: #{tpu_custom_call.1} parent=1 // pred_fallthru
      _
    %794 = vsyncpa [#allocation3], 1
    %795 = vsyncpa [#allocation6], 1
    %796 = vsyncpa [#allocation4], 1

</llo_original>
